<compile_context>
chip_gen: v7x
topology: tpu7x:2x2x1
jax: 0.10.0
libtpu: 0.0.40
codegen_flags: <defaults>
</compile_context>

<pallas_src>
import jax
import jax.numpy as jnp
from jax.experimental import pallas as pl
from jax.experimental.pallas import tpu as pltpu


def _round_up(n, m):
    return ((n + m - 1) // m) * m


def actor_kernel(x_ref, wt_ref, b_ref, mu_ref):
    # x_ref: (TM, D), wt_ref: (D, A), b_ref: (1, A), mu_ref: (TM, A)
    z = jnp.dot(x_ref[...], wt_ref[...], preferred_element_type=jnp.float32)
    mu_ref[...] = jnp.tanh(z + b_ref[...]).astype(mu_ref.dtype)


def prepare_actor_params(weight, bias, *, dtype=jnp.float32):
    """One-time parameter preparation (do at init, NOT per forward call).

    PyTorch nn.Linear layout (A, D) -> (D, A) so the kernel contracts
    canonically on the MXU; bias -> (1, A) row for lane broadcast.
    """
    wt = jnp.asarray(weight, dtype).T                 # (D, A), materialized once
    b2 = jnp.asarray(bias, jnp.float32).reshape(1, -1)  # (1, A)
    return wt, b2


def actor_forward(x, wt, b2, log_std, *, tm=512, compute_dtype=None):
    """x: (B, D); wt: (D, A) pre-transposed weight; b2: (1, A); log_std: (A,).

    Returns (mu (B, A) float32, std (A,) float32).
    """
    B, D = x.shape
    A = wt.shape[1]

    # Large batch tiles amortize the per-grid-step overhead; keep a multiple
    # of 8 sublanes.  On v7x pick tm so cdiv(B, TM) >= 2 for big batches so
    # both TensorCores get work (the "parallel" axis shards tiles across TCs).
    TM = min(tm, _round_up(B, 8))
    n_tiles = pl.cdiv(B, TM)  # ragged last block: rows past B are discarded

    if compute_dtype is not None:  # e.g. jnp.bfloat16 on v6e / v7x
        x = x.astype(compute_dtype)
        wt = wt.astype(compute_dtype)

    x_isz = x.dtype.itemsize
    w_isz = wt.dtype.itemsize

    cost = pl.CostEstimate(
        flops=2 * B * D * A,
        transcendentals=B * A,  # tanh
        bytes_accessed=B * D * x_isz + D * A * w_isz + A * 4 + B * A * 4,
    )

    # VMEM budget: double-buffered x and mu tiles + (conservatively assumed
    # double-buffered) resident weight/bias.  Raise the scoped limit only when
    # needed so the default stays portable down to v5e's 16 MiB.
    vmem_needed = (2 * TM * D * x_isz + 2 * TM * A * 4
                   + 2 * D * A * w_isz + 2 * 8 * A * 4)
    vmem_limit = None
    if vmem_needed > 12 * 1024 * 1024:
        vmem_limit = min(vmem_needed + 4 * 1024 * 1024, 100 * 1024 * 1024)

    compiler_params = pltpu.CompilerParams(
        dimension_semantics=("parallel",),
        vmem_limit_bytes=vmem_limit,
    )

    mu = pl.pallas_call(
        actor_kernel,
        out_shape=jax.ShapeDtypeStruct((B, A), jnp.float32),
        grid=(n_tiles,),
        in_specs=[
            pl.BlockSpec((TM, D), lambda i: (i, 0)),  # x: streamed / pipelined
            pl.BlockSpec((D, A), lambda i: (0, 0)),   # weight: resident
            pl.BlockSpec((1, A), lambda i: (0, 0)),   # bias: resident
        ],
        # Narrow (TM, A) output block (A == full array dim -> legal): masked
        # stores, but ~16x fewer output bytes than a 128-lane padded block at
        # small A, and no wrapper-side slice pass re-reading the output.
        out_specs=pl.BlockSpec((TM, A), lambda i: (i, 0)),
        compiler_params=compiler_params,
        cost_estimate=cost,
    )(x, wt, b2)

    std = jnp.exp(log_std)  # x-independent glue; computed outside the kernel
    return mu, std


if __name__ == "__main__":
    # Small, deterministic setup consistent with Actor(input_dim, action_dim).
    batch, input_dim, action_dim = 2, 32, 8

    key = jax.random.PRNGKey(0)
    kx, kw, kb, kx2 = jax.random.split(key, 4)

    # PyTorch nn.Linear default init: U(-1/sqrt(fan_in), 1/sqrt(fan_in)).
    bound = 1.0 / (input_dim ** 0.5)
    weight = jax.random.uniform(kw, (action_dim, input_dim), jnp.float32,
                                minval=-bound, maxval=bound)
    bias = jax.random.uniform(kb, (action_dim,), jnp.float32,
                              minval=-bound, maxval=bound)
    log_std = jnp.zeros((action_dim,), jnp.float32)  # nn.Parameter(zeros(A))

    # One-time parameter prep (init-time, outside the forward path).
    wt, b2 = prepare_actor_params(weight, bias)

    # Case 1: Actor-sized tiny batch.
    x = jax.random.normal(kx, (batch, input_dim), jnp.float32)
    mu, std = actor_forward(x, wt, b2, log_std)
    jax.block_until_ready((mu, std))

    mu_ref = jnp.tanh(x @ weight.T + bias)
    std_ref = jnp.exp(log_std)
    assert mu.shape == (batch, action_dim)
    assert std.shape == (action_dim,)
    assert jnp.allclose(mu, mu_ref, atol=1e-5, rtol=1e-5)
    assert jnp.allclose(std, std_ref, atol=1e-6, rtol=1e-6)

    # Case 2: multi-tile grid with a ragged last block (B not a multiple of
    # TM): out-of-bounds rows are computed on garbage and dropped at writeback.
    B2 = 200
    x2 = jax.random.normal(kx2, (B2, input_dim), jnp.float32)
    mu2, _ = actor_forward(x2, wt, b2, log_std, tm=64)
    jax.block_until_ready(mu2)
    mu2_ref = jnp.tanh(x2 @ weight.T + bias)
    assert mu2.shape == (B2, action_dim)
    assert jnp.allclose(mu2, mu2_ref, atol=1e-5, rtol=1e-5)

    # TODO(synk): Actor.sample() (Normal sampling / log_prob / entropy) is
    # RNG-side glue around this forward pass, not a kernel hot path.
    print("KERNEL_OK")
</pallas_src>

<mosaic_0001>
module attributes {stable_mosaic.version = 11 : i64} {
  func.func @actor_kernel(%arg0: i32, %arg1: memref<8x32xf32, #tpu.memory_space<vmem>>, %arg2: memref<32x8xf32, #tpu.memory_space<vmem>>, %arg3: memref<1x8xf32, #tpu.memory_space<vmem>>, %arg4: memref<8x8xf32, #tpu.memory_space<vmem>>) attributes {dimension_semantics = [#tpu.dimension_semantics<parallel>], iteration_bounds = array<i64: 1>, scalar_prefetch = 0 : i64, scratch_operands = 0 : i64, tpu.core_type = #tpu.core_type<tc>, window_params = [{transform_indices = @transform_0, window_bounds = array<i64: 8, 32>}, {pipeline_mode = #tpu.pipeline_mode<synchronous>, transform_indices = @transform_1, window_bounds = array<i64: 32, 8>}, {pipeline_mode = #tpu.pipeline_mode<synchronous>, transform_indices = @transform_2, window_bounds = array<i64: 1, 8>}, {transform_indices = @transform_3, window_bounds = array<i64: 8, 8>}]} {
    %c0 = arith.constant 0 : index
    %c0_0 = arith.constant 0 : index
    %0 = vector.load %arg1[%c0, %c0_0] : memref<8x32xf32, #tpu.memory_space<vmem>>, vector<8x32xf32>
    %c0_1 = arith.constant 0 : index
    %c0_2 = arith.constant 0 : index
    %1 = vector.load %arg2[%c0_1, %c0_2] : memref<32x8xf32, #tpu.memory_space<vmem>>, vector<32x8xf32>
    %cst = arith.constant dense<0.000000e+00> : vector<8x8xf32>
    %2 = tpu.matmul %0, %1, %cst {dimension_numbers = #tpu.dot_dimension_numbers<[1], [0], [0], [1], [0, 0, 1, 1], [], []>} : vector<8x32xf32>, vector<32x8xf32>, vector<8x8xf32> -> vector<8x8xf32>
    %c0_3 = arith.constant 0 : index
    %c0_4 = arith.constant 0 : index
    %3 = vector.load %arg3[%c0_3, %c0_4] : memref<1x8xf32, #tpu.memory_space<vmem>>, vector<1x8xf32>
    %4 = vector.broadcast %3 : vector<1x8xf32> to vector<8x8xf32>
    %5 = arith.addf %2, %4 : vector<8x8xf32>
    %6 = math.tanh %5 : vector<8x8xf32>
    %c0_5 = arith.constant 0 : index
    %c0_6 = arith.constant 0 : index
    %7 = vector.load %arg4[%c0_5, %c0_6] : memref<8x8xf32, #tpu.memory_space<vmem>>, vector<8x8xf32>
    tpu.vector_store %arg4[%c0_5, %c0_6], %6 {strides = array<i32>} : memref<8x8xf32, #tpu.memory_space<vmem>>, vector<8x8xf32>,
    return
  }
  func.func @transform_0(%arg0: i32) -> (i32, i32) {
    %c0_i32 = arith.constant 0 : i32
    %c0_i32_0 = arith.constant 0 : i32
    return %arg0, %c0_i32 : i32, i32
  }
  func.func @transform_1(%arg0: i32) -> (i32, i32) {
    %c0_i32 = arith.constant 0 : i32
    %c0_i32_0 = arith.constant 0 : i32
    %c0_i32_1 = arith.constant 0 : i32
    return %c0_i32, %c0_i32_0 : i32, i32
  }
  func.func @transform_2(%arg0: i32) -> (i32, i32) {
    %c0_i32 = arith.constant 0 : i32
    %c0_i32_0 = arith.constant 0 : i32
    %c0_i32_1 = arith.constant 0 : i32
    return %c0_i32, %c0_i32_0 : i32, i32
  }
  func.func @transform_3(%arg0: i32) -> (i32, i32) {
    %c0_i32 = arith.constant 0 : i32
    %c0_i32_0 = arith.constant 0 : i32
    return %arg0, %c0_i32 : i32, i32
  }
}

</mosaic_0001>

<llo_original>
// kernel: tpu_custom_call.1
$region0: #{tpu_custom_call.1}
  #allocation0 [shape = 'u32[]', space=smem, size = 0x4, offset = 0x4, fixed_abs, tag = 'smem constant byte address 0x4 - core index']
  #allocation1 [shape = 'u32[144,128]{1,0:T(1,128)}', space=vmem, size = 0x12000, scoped, tag = 'internal scratch']
  %s0 = inlined_call_operand.vmem [shape: f32[2,32], index: 0, kind: input, shape index: {}]
  %s1 = inlined_call_operand.vmem [shape: f32[32,8], index: 1, kind: input, shape index: {}]
  %s2 = inlined_call_operand.vmem [shape: f32[1,8], index: 2, kind: input, shape index: {}]
  %s3 = inlined_call_operand.hbm [shape: f32[2,8], index: 3, kind: output, shape index: {}]
  %s4 = sld [smem:[#allocation0]]
  $region22: #{tpu_custom_call.1} parent=0
    _
  %s6 = ssub.s32 1, %s4
  %s7 = scalar_select 0, %s6, %s4
  $region1: #{tpu_custom_call.1} parent=0
    #allocation2 [shape = 'u8[4096]{0}', space=vmem, size = 0x1000, scoped, tag = 'output window, operand 0, single buffered']
    #allocation3 [shape = 's32[1]{0}', space=sflag, size = 0x4, scoped, tag = 'scoped memory for tpu_custom_call.1']
    %8 = vsyncpa [#allocation3], 0
    // Predicated region
    $region2: #{tpu_custom_call.1} parent=1 // pred_check
      _
    $region3: #{tpu_custom_call.1} parent=1 // pred_check_branch
      %10 = sbr.rel (0) target = $region5
    $region4: #{tpu_custom_call.1} parent=1 // pred_region
      _
    $region5: #{tpu_custom_call.1} parent=1 // pred_fallthru
      _
    // Predicated region
    $region6: #{tpu_custom_call.1} parent=1 // pred_check
      _
    $region7: #{tpu_custom_call.1} parent=1 // pred_check_branch
      %12 = sbr.rel (0) target = $region9
    $region8: #{tpu_custom_call.1} parent=1 // pred_region
      _
    $region9: #{tpu_custom_call.1} parent=1 // pred_fallthru
      _
    // Predicated region
    $region10: #{tpu_custom_call.1} parent=1 // pred_check
      _
    $region11: #{tpu_custom_call.1} parent=1 // pred_check_branch
      %14 = sbr.rel (0) target = $region13
    $region12: #{tpu_custom_call.1} parent=1 // pred_region
      _
    $region13: #{tpu_custom_call.1} parent=1 // pred_fallthru
      _
    %v15 = vld [vmem:[%s0] sm:$0xff]
    %v16 = vld [vmem:[%s1] sm:$0xff]
    %v17 = vld [vmem:[%s1 + $0x8] sm:$0xff]
    %v18 = vld [vmem:[%s1 + $0x10] sm:$0xff]
    %v19 = vld [vmem:[%s1 + $0x18] sm:$0xff]
    %v20 = vld [vmem:[%s2] sm:$0x1]
    %v22 = vlaneseq
    %v23 = vshrl.u32 %v22, 7
    %v24 = vsub.s32 0, %v23
    %v25 = vrot.slane %v20, %v24
    %vm27 = vcmask 261120
    %v29 = vsel %vm27, %v15, 0
    %31 = vmatprep.subr.mxu0 0.0
    %32 = vmatpush1.msra.mxu0 %v16
    %33 = vmatprep.subr.mxu0 0.0
    %34 = vmatpush1.msra.mxu0 %v17
    %35 = vmatprep.subr.mxu0 0.0
    %36 = vmatpush1.msra.mxu0 %v18
    %37 = vmatprep.subr.mxu0 0.0
    %38 = vmatpush1.msra.mxu0 %v19
    %39 = vmatprep.subr.mxu0 0.0
    %40 = vmatpush1.msra.mxu0 0.0
    %41 = vmatprep.subr.mxu0 0.0
    %42 = vmatpush1.msra.mxu0 0.0
    %43 = vmatprep.subr.mxu0 0.0
    %44 = vmatpush1.msra.mxu0 0.0
    %45 = vmatprep.subr.mxu0 0.0
    %46 = vmatpush1.msra.mxu0 0.0
    %47 = vmatprep.subr.mxu0 0.0
    %48 = vmatpush1.msra.mxu0 0.0
    %49 = vmatprep.subr.mxu0 0.0
    %50 = vmatpush1.msra.mxu0 0.0
    %51 = vmatprep.subr.mxu0 0.0
    %52 = vmatpush1.msra.mxu0 0.0
    %53 = vmatprep.subr.mxu0 0.0
    %54 = vmatpush1.msra.mxu0 0.0
    %55 = vmatprep.subr.mxu0 0.0
    %56 = vmatpush1.msra.mxu0 0.0
    %57 = vmatprep.subr.mxu0 0.0
    %58 = vmatpush1.msra.mxu0 0.0
    %59 = vmatprep.subr.mxu0 0.0
    %60 = vmatpush1.msra.mxu0 0.0
    %61 = vmatprep.subr.mxu0 0.0
    %62 = vmatpush1.msra.mxu0 0.0
    %63 = vmatprep.subr.mxu0 0.0
    %64 = vmatpush1.msra.mxu0 0.0
    %65 = vmatprep.subr.mxu0 0.0
    %66 = vmatpush1.msra.mxu0 0.0
    %67 = vmatprep.subr.mxu0 0.0
    %68 = vmatpush1.msra.mxu0 0.0
    %69 = vmatprep.subr.mxu0 0.0
    %70 = vmatpush1.msra.mxu0 0.0
    %71 = vmatprep.subr.mxu0 0.0
    %72 = vmatpush1.msra.mxu0 0.0
    %73 = vmatprep.subr.mxu0 0.0
    %74 = vmatpush1.msra.mxu0 0.0
    %75 = vmatprep.subr.mxu0 0.0
    %76 = vmatpush1.msra.mxu0 0.0
    %77 = vmatprep.subr.mxu0 0.0
    %78 = vmatpush1.msra.mxu0 0.0
    %79 = vmatprep.subr.mxu0 0.0
    %80 = vmatpush1.msra.mxu0 0.0
    %81 = vmatprep.subr.mxu0 0.0
    %82 = vmatpush1.msra.mxu0 0.0
    %83 = vmatprep.subr.mxu0 0.0
    %84 = vmatpush1.msra.mxu0 0.0
    %85 = vmatprep.subr.mxu0 0.0
    %86 = vmatpush1.msra.mxu0 0.0
    %87 = vmatprep.subr.mxu0 0.0
    %88 = vmatpush1.msra.mxu0 0.0
    %89 = vmatprep.subr.mxu0 0.0
    %90 = vmatpush1.msra.mxu0 0.0
    %91 = vmatprep.subr.mxu0 0.0
    %92 = vmatpush1.msra.mxu0 0.0
    %93 = vmatprep.subr.mxu0 0.0
    %94 = vmatpush1.msra.mxu0 0.0
    %95 = vmatprep.mubr.f32.mxu0 0.0
    %96 = vmatmul.mubr.f32.gmra.mrb[0].mxu0 %v29
    %v97 = vpop.f32.mrb[0].mxu0
    %v98 = vadd.f32 %v25, %v97
    %v99 = vpop.f32.mrb[0].mxu0
    %100 = vdwg.mxu0
    %v101 = vtanh.pop %v98
    %vm102 = vcmask 64512
    %103 = vst.msk [vmem:[#allocation2] sm:$0xff] %vm102, %v101
    // Predicated region
    $region14: #{tpu_custom_call.1} parent=1 // pred_check
      _
    $region15: #{tpu_custom_call.1} parent=1 // pred_check_branch
      %105 = sbr.rel (0) target = $region17
    $region16: #{tpu_custom_call.1} parent=1 // pred_region
      %s107 = ssub.s32 128, 32
      %108 = vsyncadd [#allocation3], %s107
      %s109 = sshll.u32 [#allocation2], 4
      %s110 = int_to_ptr.vmem [resolvable:$true] %s109
      %115 = dma.vmem_to_hbm [thread:$0]  %s110, 32, %s3, [#allocation3], 32, 32, 2
    $region17: #{tpu_custom_call.1} parent=1 // pred_fallthru
      _
    // Predicated region
    $region18: #{tpu_custom_call.1} parent=1 // pred_check
      _
    $region19: #{tpu_custom_call.1} parent=1 // pred_check_branch
      %117 = sbr.rel (0) target = $region21
    $region20: #{tpu_custom_call.1} parent=1 // pred_region
      %118 = dma.done [#allocation3], 128
    $region21: #{tpu_custom_call.1} parent=1 // pred_fallthru
      _
    %119 = vsyncpa [#allocation3], 1

</llo_original>
